<compile_context>
chip_gen: v6e
topology: v6e:2x2x1
jax: 0.10.0
libtpu: 0.0.40
codegen_flags: <defaults>
</compile_context>

<pallas_src>
import functools

import jax
import jax.numpy as jnp
from jax.experimental import pallas as pl
from jax.experimental.pallas import tpu as pltpu


def _round_up(n: int, m: int) -> int:
    return ((n + m - 1) // m) * m


def _preprocess_kernel(x_ref, w1_ref, b1_ref, w2_ref, b2_ref, o_ref):
    # fc1 + relu: MXU matmul with f32 accumulation (HIGHEST = true f32, cheap here
    # because the kernel is HBM-bound, not MXU-bound); bias-add + ReLU on the VPU.
    t = jnp.dot(
        x_ref[...],
        w1_ref[...],
        preferred_element_type=jnp.float32,
        precision=jax.lax.Precision.HIGHEST,
    )
    t = jnp.maximum(t + b1_ref[...], 0.0)
    # fc2 + relu
    t = jnp.dot(
        t,
        w2_ref[...],
        preferred_element_type=jnp.float32,
        precision=jax.lax.Precision.HIGHEST,
    )
    t = jnp.maximum(t + b2_ref[...], 0.0)
    o_ref[...] = t.astype(o_ref.dtype)


@functools.partial(jax.jit, static_argnames=("batch_tile",))
def preprocess_forward(x, w1, b1, w2, b2, *, batch_tile=4096):
    """PreProcess forward: relu(relu(x @ w1 + b1) @ w2 + b2).

    x:  (B, input_size)
    w1: (input_size, processed_x_size)   == PyTorch fc1.weight.T
    b1: (1, processed_x_size)
    w2: (processed_x_size, processed_x_size)
    b2: (1, processed_x_size)
    """
    B, D = x.shape
    H = w1.shape[1]
    assert w1.shape == (D, H) and w2.shape == (H, H)
    assert b1.shape == (1, H) and b2.shape == (1, H)

    # Batch tile: multiple of 8 (f32 sublane), large by default to amortize
    # per-grid-step overhead and issue big DMAs.
    bt = min(batch_tile, _round_up(B, 8))
    bt = max(8, _round_up(bt, 8))
    # v7x (2 TensorCores/chip): make sure the "parallel" batch axis has >=2 grid
    # steps when the batch allows it, so both cores get work.  Neutral on v5e/v6e.
    if pl.cdiv(B, bt) < 2 and B > 8:
        bt = _round_up(pl.cdiv(B, 2), 8)
    grid = (pl.cdiv(B, bt),)

    def resident(shape):
        # Whole array, constant block index -> stays resident in VMEM across steps.
        return pl.BlockSpec(shape, lambda i: (0, 0))

    # Advisory cost hint for XLA scheduling around the custom call.
    flops = 2 * B * D * H + 2 * B * H * H + 4 * B * H
    bytes_accessed = 4 * (B * D + B * H + D * H + H * H + 2 * H)
    cost = pl.CostEstimate(
        flops=flops, transcendentals=0, bytes_accessed=bytes_accessed
    )

    out = pl.pallas_call(
        _preprocess_kernel,
        out_shape=jax.ShapeDtypeStruct((B, H), x.dtype),
        grid_spec=pl.GridSpec(
            grid=grid,
            in_specs=[
                # x streamed at its true width; last block dim == full array dim.
                pl.BlockSpec((bt, D), lambda i: (i, 0)),
                resident((D, H)),  # w1
                resident((1, H)),  # b1
                resident((H, H)),  # w2
                resident((1, H)),  # b2
            ],
            # Output written at its true width H (no padded slab, no post-slice).
            out_specs=pl.BlockSpec((bt, H), lambda i: (i, 0)),
        ),
        compiler_params=pltpu.CompilerParams(
            dimension_semantics=("parallel",),  # shard batch grid across TensorCores
            vmem_limit_bytes=32 * 1024 * 1024,
        ),
        cost_estimate=cost,
    )(x, w1, b1, w2, b2)

    return out


def init_preprocess_params(key, input_size, processed_x_size, dtype=jnp.float32):
    """PyTorch-Linear-style init: U(-1/sqrt(fan_in), 1/sqrt(fan_in)).

    Weights are stored as (in_features, out_features) == PyTorch weight.T.
    """
    keys = jax.random.split(key, 4)

    def lin(kw, kb, fan_in, fan_out):
        bound = 1.0 / jnp.sqrt(fan_in)
        w = jax.random.uniform(kw, (fan_in, fan_out), dtype, -bound, bound)
        b = jax.random.uniform(kb, (1, fan_out), dtype, -bound, bound)
        return w, b

    w1, b1 = lin(keys[0], keys[1], input_size, processed_x_size)
    w2, b2 = lin(keys[2], keys[3], processed_x_size, processed_x_size)
    return w1, b1, w2, b2


if __name__ == "__main__":
    key = jax.random.PRNGKey(0)
    k_params, k_x = jax.random.split(key)

    # Small shapes consistent with the module: input_size=32, processed_x_size=64.
    B, D, H = 16, 32, 64

    w1, b1, w2, b2 = init_preprocess_params(k_params, D, H)
    x = jax.random.normal(k_x, (B, D), dtype=jnp.float32)

    # batch_tile=8 just to exercise a multi-step grid at these tiny shapes;
    # at realistic batch sizes the default (4096) tile is used.
    out = preprocess_forward(x, w1, b1, w2, b2, batch_tile=8)
    out = jax.block_until_ready(out)

    # Sanity check against a plain-JAX f32 reference of the same forward pass.
    hi = jax.lax.Precision.HIGHEST
    t = jnp.maximum(jnp.dot(x, w1, precision=hi) + b1, 0.0)
    ref = jnp.maximum(jnp.dot(t, w2, precision=hi) + b2, 0.0)
    assert out.shape == (B, H)
    assert jnp.allclose(out, ref, atol=1e-5, rtol=1e-5)

    print("KERNEL_OK")
</pallas_src>

<mosaic_0001>
module attributes {stable_mosaic.version = 11 : i64} {
  func.func @_preprocess_kernel(%arg0: i32, %arg1: memref<8x32xf32, #tpu.memory_space<vmem>>, %arg2: memref<32x64xf32, #tpu.memory_space<vmem>>, %arg3: memref<1x64xf32, #tpu.memory_space<vmem>>, %arg4: memref<64x64xf32, #tpu.memory_space<vmem>>, %arg5: memref<1x64xf32, #tpu.memory_space<vmem>>, %arg6: memref<8x64xf32, #tpu.memory_space<vmem>>) attributes {dimension_semantics = [#tpu.dimension_semantics<parallel>], iteration_bounds = array<i64: 2>, scalar_prefetch = 0 : i64, scratch_operands = 0 : i64, tpu.core_type = #tpu.core_type<tc>, window_params = [{transform_indices = @transform_0, window_bounds = array<i64: 8, 32>}, {pipeline_mode = #tpu.pipeline_mode<synchronous>, transform_indices = @transform_1, window_bounds = array<i64: 32, 64>}, {pipeline_mode = #tpu.pipeline_mode<synchronous>, transform_indices = @transform_2, window_bounds = array<i64: 1, 64>}, {pipeline_mode = #tpu.pipeline_mode<synchronous>, transform_indices = @transform_3, window_bounds = array<i64: 64, 64>}, {pipeline_mode = #tpu.pipeline_mode<synchronous>, transform_indices = @transform_4, window_bounds = array<i64: 1, 64>}, {transform_indices = @transform_5, window_bounds = array<i64: 8, 64>}]} {
    %c0 = arith.constant 0 : index
    %c0_0 = arith.constant 0 : index
    %0 = vector.load %arg1[%c0, %c0_0] : memref<8x32xf32, #tpu.memory_space<vmem>>, vector<8x32xf32>
    %c0_1 = arith.constant 0 : index
    %c0_2 = arith.constant 0 : index
    %1 = vector.load %arg2[%c0_1, %c0_2] : memref<32x64xf32, #tpu.memory_space<vmem>>, vector<32x64xf32>
    %cst = arith.constant dense<0.000000e+00> : vector<8x64xf32>
    %2 = tpu.matmul %0, %1, %cst {dimension_numbers = #tpu.dot_dimension_numbers<[1], [0], [0], [1], [0, 0, 1, 1], [], []>, precision = #tpu.contract_precision<fp32>} : vector<8x32xf32>, vector<32x64xf32>, vector<8x64xf32> -> vector<8x64xf32>
    %c0_3 = arith.constant 0 : index
    %c0_4 = arith.constant 0 : index
    %3 = vector.load %arg3[%c0_3, %c0_4] : memref<1x64xf32, #tpu.memory_space<vmem>>, vector<1x64xf32>
    %4 = vector.broadcast %3 : vector<1x64xf32> to vector<8x64xf32>
    %5 = arith.addf %2, %4 : vector<8x64xf32>
    %cst_5 = arith.constant 0.000000e+00 : f32
    %6 = vector.broadcast %cst_5 : f32 to vector<8x64xf32>
    %7 = arith.maximumf %5, %6 : vector<8x64xf32>
    %c0_6 = arith.constant 0 : index
    %c0_7 = arith.constant 0 : index
    %8 = vector.load %arg4[%c0_6, %c0_7] : memref<64x64xf32, #tpu.memory_space<vmem>>, vector<64x64xf32>
    %cst_8 = arith.constant dense<0.000000e+00> : vector<8x64xf32>
    %9 = tpu.matmul %7, %8, %cst_8 {dimension_numbers = #tpu.dot_dimension_numbers<[1], [0], [0], [1], [0, 0, 1, 1], [], []>, precision = #tpu.contract_precision<fp32>} : vector<8x64xf32>, vector<64x64xf32>, vector<8x64xf32> -> vector<8x64xf32>
    %c0_9 = arith.constant 0 : index
    %c0_10 = arith.constant 0 : index
    %10 = vector.load %arg5[%c0_9, %c0_10] : memref<1x64xf32, #tpu.memory_space<vmem>>, vector<1x64xf32>
    %11 = vector.broadcast %10 : vector<1x64xf32> to vector<8x64xf32>
    %12 = arith.addf %9, %11 : vector<8x64xf32>
    %cst_11 = arith.constant 0.000000e+00 : f32
    %13 = vector.broadcast %cst_11 : f32 to vector<8x64xf32>
    %14 = arith.maximumf %12, %13 : vector<8x64xf32>
    %c0_12 = arith.constant 0 : index
    %c0_13 = arith.constant 0 : index
    %15 = vector.load %arg6[%c0_12, %c0_13] : memref<8x64xf32, #tpu.memory_space<vmem>>, vector<8x64xf32>
    tpu.vector_store %arg6[%c0_12, %c0_13], %14 {strides = array<i32>} : memref<8x64xf32, #tpu.memory_space<vmem>>, vector<8x64xf32>,
    return
  }
  func.func @transform_0(%arg0: i32) -> (i32, i32) {
    %c0_i32 = arith.constant 0 : i32
    %c0_i32_0 = arith.constant 0 : i32
    return %arg0, %c0_i32 : i32, i32
  }
  func.func @transform_1(%arg0: i32) -> (i32, i32) {
    %c0_i32 = arith.constant 0 : i32
    %c0_i32_0 = arith.constant 0 : i32
    %c0_i32_1 = arith.constant 0 : i32
    return %c0_i32, %c0_i32_0 : i32, i32
  }
  func.func @transform_2(%arg0: i32) -> (i32, i32) {
    %c0_i32 = arith.constant 0 : i32
    %c0_i32_0 = arith.constant 0 : i32
    %c0_i32_1 = arith.constant 0 : i32
    return %c0_i32, %c0_i32_0 : i32, i32
  }
  func.func @transform_3(%arg0: i32) -> (i32, i32) {
    %c0_i32 = arith.constant 0 : i32
    %c0_i32_0 = arith.constant 0 : i32
    %c0_i32_1 = arith.constant 0 : i32
    return %c0_i32, %c0_i32_0 : i32, i32
  }
  func.func @transform_4(%arg0: i32) -> (i32, i32) {
    %c0_i32 = arith.constant 0 : i32
    %c0_i32_0 = arith.constant 0 : i32
    %c0_i32_1 = arith.constant 0 : i32
    return %c0_i32, %c0_i32_0 : i32, i32
  }
  func.func @transform_5(%arg0: i32) -> (i32, i32) {
    %c0_i32 = arith.constant 0 : i32
    %c0_i32_0 = arith.constant 0 : i32
    return %arg0, %c0_i32 : i32, i32
  }
}

</mosaic_0001>

<llo_original>
// kernel: preprocess_forward.1
$region0: #{preprocess_forward.1}
  #allocation0 [shape = 'u32[]', space=smem, size = 0x4, offset = 0x4, fixed_abs, tag = 'smem constant byte address 0x4 - core index']
  #allocation1 [shape = 'u32[144,128]{1,0:T(1,128)}', space=vmem, size = 0x12000, scoped, tag = 'internal scratch']
  %s0 = inlined_call_operand.hbm [shape: f32[16,32], index: 0, kind: input, shape index: {}]
  %s1 = inlined_call_operand.hbm [shape: f32[32,64], index: 1, kind: input, shape index: {}]
  %s2 = inlined_call_operand.vmem [shape: f32[1,64], index: 2, kind: input, shape index: {}]
  %s3 = inlined_call_operand.hbm [shape: f32[64,64], index: 3, kind: input, shape index: {}]
  %s4 = inlined_call_operand.vmem [shape: f32[1,64], index: 4, kind: input, shape index: {}]
  %s5 = inlined_call_operand.hbm [shape: f32[16,64], index: 5, kind: output, shape index: {}]
  %s6 = sld [smem:[#allocation0]]
  $region65: #{preprocess_forward.1} parent=0
    _
  %s8 = ssub.s32 1, %s6
  %s9 = scalar_select 0, %s8, %s6
  $region1: #{preprocess_forward.1} parent=0
    #allocation2 [shape = 'u8[8192]{0}', space=vmem, size = 0x2000, scoped, tag = 'input window, operand 0']
    #allocation3 [shape = 's32[2]{0}', space=sflag, size = 0x8, scoped, tag = 'scoped memory for preprocess_forward.1']
    #allocation4 [shape = 's32[2]{0}', space=sflag, size = 0x8, scoped, tag = 'scoped memory for preprocess_forward.1']
    #allocation5 [shape = 'u8[16384]{0}', space=vmem, size = 0x4000, scoped, tag = 'input window, operand 1, single buffered']
    #allocation6 [shape = 's32[1]{0}', space=sflag, size = 0x4, scoped, tag = 'scoped memory for preprocess_forward.1']
    #allocation7 [shape = 'u8[32768]{0}', space=vmem, size = 0x8000, scoped, tag = 'input window, operand 3, single buffered']
    #allocation8 [shape = 'u8[8192]{0}', space=vmem, size = 0x2000, scoped, tag = 'output window, operand 0']
    %10 = vsyncpa [#allocation3], 0
    %s11 = scalar_lea.sflag [#allocation3], 1
    %12 = vsyncpa %s11, 0
    %13 = vsyncpa [#allocation6], 0
    %14 = vsyncpa [#allocation4], 0
    %s15 = scalar_lea.sflag [#allocation4], 1
    %16 = vsyncpa %s15, 0
    loop: start=0, step=1, limit=4
    $region2: #{preprocess_forward.1} parent=1 // loop_pre_header
      _
    $region3: #{preprocess_forward.1} parent=1 // loop_header
      %s18 = sphi 0, %s22
      %p19 = scmp.ge.s32.totalorder %s18, 4
      %s28 = sphi 0, %s30
      %s31 = sphi 0, %s28
      %s32 = sphi 0, %s31
      %s48 = sphi 0, %s32
      %s52 = sphi 0, %s52
      %s54 = sphi 0, %s52
      %s55 = sphi 0, %s54
      %s69 = sphi 0, %s55
      %s73 = sphi 0, %s73
      %s75 = sphi 0, %s73
      %s76 = sphi 0, %s75
      %s90 = sphi 0, %s76
      %s94 = sphi 0, %s94
      %s96 = sphi 0, %s94
      %s97 = sphi 0, %s96
      %s111 = sphi 0, %s97
      %s115 = sphi 0, %s115
      %s117 = sphi 0, %s115
      %s118 = sphi 0, %s117
      %s132 = sphi 0, %s118
      %s138 = sphi 0, %s140
      %s141 = sphi 0, %s138
      %s142 = sphi 0, %s141
      %s158 = sphi 0, %s142
    $region4: #{preprocess_forward.1} parent=1 // loop_header_branch
      %21 = sbr.rel (%p19) target = $region8
    $region5: #{preprocess_forward.1} parent=1 // loop_body
      %s23 = ssub.s32 %s18, 1
      %s24 = ssub.s32 %s18, 2
      %s25 = sadd.s32 %s18, 1
      %s26 = ssub.s32 %s18, %s25
      %p27 = scmp.eq.s32.totalorder %s26, 0
      %s29 = sadd.s32 %s28, 1
      %s30 = scalar_select %p27, %s28, %s29
      %p33 = pneg %p27
      %p34 = scmp.eq.s32.totalorder %s18, 1
      %p35 = por %p33, %p34
      %p36 = scmp.ne.s32.totalorder %s28, %s31
      %p37 = scmp.eq.s32.totalorder %s18, 0
      %p38 = por %p36, %p37
      %p39 = scmp.ne.s32.totalorder %s28, %s31
      %p40 = scmp.eq.s32.totalorder %s23, 1
      %p41 = por %p39, %p40
      %p42 = scmp.ne.s32.totalorder %s31, %s32
      %p43 = scmp.eq.s32.totalorder %s23, 0
      %p44 = por %p42, %p43
      %p45 = scmp.ne.s32.totalorder %s31, %s32
      %p46 = scmp.eq.s32.totalorder %s24, 1
      %p47 = por %p45, %p46
      %p49 = scmp.ne.s32.totalorder %s32, %s48
      %p50 = scmp.eq.s32.totalorder %s24, 0
      %p51 = por %p49, %p50
      %s53 = sadd.s32 %s52, 1
      %p56 = scmp.eq.s32.totalorder %s18, 1
      %p57 = scmp.ne.s32.totalorder %s52, %s54
      %p58 = scmp.eq.s32.totalorder %s18, 0
      %p59 = por %p57, %p58
      %p60 = scmp.ne.s32.totalorder %s52, %s54
      %p61 = scmp.eq.s32.totalorder %s23, 1
      %p62 = por %p60, %p61
      %p63 = scmp.ne.s32.totalorder %s54, %s55
      %p64 = scmp.eq.s32.totalorder %s23, 0
      %p65 = por %p63, %p64
      %p66 = scmp.ne.s32.totalorder %s54, %s55
      %p67 = scmp.eq.s32.totalorder %s24, 1
      %p68 = por %p66, %p67
      %p70 = scmp.ne.s32.totalorder %s55, %s69
      %p71 = scmp.eq.s32.totalorder %s24, 0
      %p72 = por %p70, %p71
      %s74 = sadd.s32 %s73, 1
      %p77 = scmp.eq.s32.totalorder %s18, 1
      %p78 = scmp.ne.s32.totalorder %s73, %s75
      %p79 = scmp.eq.s32.totalorder %s18, 0
      %p80 = por %p78, %p79
      %p81 = scmp.ne.s32.totalorder %s73, %s75
      %p82 = scmp.eq.s32.totalorder %s23, 1
      %p83 = por %p81, %p82
      %p84 = scmp.ne.s32.totalorder %s75, %s76
      %p85 = scmp.eq.s32.totalorder %s23, 0
      %p86 = por %p84, %p85
      %p87 = scmp.ne.s32.totalorder %s75, %s76
      %p88 = scmp.eq.s32.totalorder %s24, 1
      %p89 = por %p87, %p88
      %p91 = scmp.ne.s32.totalorder %s76, %s90
      %p92 = scmp.eq.s32.totalorder %s24, 0
      %p93 = por %p91, %p92
      %s95 = sadd.s32 %s94, 1
      %p98 = scmp.eq.s32.totalorder %s18, 1
      %p99 = scmp.ne.s32.totalorder %s94, %s96
      %p100 = scmp.eq.s32.totalorder %s18, 0
      %p101 = por %p99, %p100
      %p102 = scmp.ne.s32.totalorder %s94, %s96
      %p103 = scmp.eq.s32.totalorder %s23, 1
      %p104 = por %p102, %p103
      %p105 = scmp.ne.s32.totalorder %s96, %s97
      %p106 = scmp.eq.s32.totalorder %s23, 0
      %p107 = por %p105, %p106
      %p108 = scmp.ne.s32.totalorder %s96, %s97
      %p109 = scmp.eq.s32.totalorder %s24, 1
      %p110 = por %p108, %p109
      %p112 = scmp.ne.s32.totalorder %s97, %s111
      %p113 = scmp.eq.s32.totalorder %s24, 0
      %p114 = por %p112, %p113
      %s116 = sadd.s32 %s115, 1
      %p119 = scmp.eq.s32.totalorder %s18, 1
      %p120 = scmp.ne.s32.totalorder %s115, %s117
      %p121 = scmp.eq.s32.totalorder %s18, 0
      %p122 = por %p120, %p121
      %p123 = scmp.ne.s32.totalorder %s115, %s117
      %p124 = scmp.eq.s32.totalorder %s23, 1
      %p125 = por %p123, %p124
      %p126 = scmp.ne.s32.totalorder %s117, %s118
      %p127 = scmp.eq.s32.totalorder %s23, 0
      %p128 = por %p126, %p127
      %p129 = scmp.ne.s32.totalorder %s117, %s118
      %p130 = scmp.eq.s32.totalorder %s24, 1
      %p131 = por %p129, %p130
      %p133 = scmp.ne.s32.totalorder %s118, %s132
      %p134 = scmp.eq.s32.totalorder %s24, 0
      %p135 = por %p133, %p134
      %s136 = ssub.s32 %s18, %s25
      %p137 = scmp.eq.s32.totalorder %s136, 0
      %s139 = sadd.s32 %s138, 1
      %s140 = scalar_select %p137, %s138, %s139
      %p143 = pneg %p137
      %p144 = scmp.eq.s32.totalorder %s18, 1
      %p145 = por %p143, %p144
      %p146 = scmp.ne.s32.totalorder %s138, %s141
      %p147 = scmp.eq.s32.totalorder %s18, 0
      %p148 = por %p146, %p147
      %p149 = scmp.ne.s32.totalorder %s138, %s141
      %p150 = scmp.eq.s32.totalorder %s23, 1
      %p151 = por %p149, %p150
      %p152 = scmp.ne.s32.totalorder %s141, %s142
      %p153 = scmp.eq.s32.totalorder %s23, 0
      %p154 = por %p152, %p153
      %p155 = scmp.ne.s32.totalorder %s141, %s142
      %p156 = scmp.eq.s32.totalorder %s24, 1
      %p157 = por %p155, %p156
      %p159 = scmp.ne.s32.totalorder %s142, %s158
      %p160 = scmp.eq.s32.totalorder %s24, 0
      %p161 = por %p159, %p160
      %p162 = scmp.le.s32.totalorder 1, %s18
      %p163 = scmp.lt.s32.totalorder %s18, 3
      %p164 = pnand %p162, %p163
      %p165 = pneg %p164
      // Predicated region
      $region9: #{preprocess_forward.1} parent=5 // pred_check
        _
      $region10: #{preprocess_forward.1} parent=5 // pred_check_branch
        %167 = sbr.rel (%p164) target = $region12
      $region11: #{preprocess_forward.1} parent=5 // pred_region
        %s168 = ssub.s32 %s18, 1
        // Predicated region
        $region13: #{preprocess_forward.1} parent=11 // pred_check
          %p169 = pneg %p65
        $region14: #{preprocess_forward.1} parent=11 // pred_check_branch
          %171 = sbr.rel (%p169) target = $region16
        $region15: #{preprocess_forward.1} parent=11 // pred_region
          %s173 = ssub.s32 512, 512
          %174 = vsyncadd [#allocation6], %s173
          %s175 = sshll.u32 [#allocation5], 4
          %s176 = int_to_ptr.vmem [resolvable:$true] %s175
          %181 = dma.hbm_to_vmem [thread:$0]  %s1, 512, %s176, [#allocation6], 128, 128, 8
        $region16: #{preprocess_forward.1} parent=11 // pred_fallthru
          _
        // Predicated region
        $region17: #{preprocess_forward.1} parent=11 // pred_check
          %p182 = pneg %p86
        $region18: #{preprocess_forward.1} parent=11 // pred_check_branch
          %184 = sbr.rel (%p182) target = $region20
        $region19: #{preprocess_forward.1} parent=11 // pred_region
          _
        $region20: #{preprocess_forward.1} parent=11 // pred_fallthru
          _
        // Predicated region
        $region21: #{preprocess_forward.1} parent=11 // pred_check
          %p185 = pneg %p107
        $region22: #{preprocess_forward.1} parent=11 // pred_check_branch
          %187 = sbr.rel (%p185) target = $region24
        $region23: #{preprocess_forward.1} parent=11 // pred_region
          %s189 = ssub.s32 1024, 1024
          %190 = vsyncadd [#allocation6], %s189
          %s191 = sshll.u32 [#allocation7], 4
          %s192 = int_to_ptr.vmem [resolvable:$true] %s191
          %197 = dma.hbm_to_vmem [thread:$0]  %s3, 1024, %s192, [#allocation6], 128, 128, 8
        $region24: #{preprocess_forward.1} parent=11 // pred_fallthru
          _
        // Predicated region
        $region25: #{preprocess_forward.1} parent=11 // pred_check
          %p198 = pneg %p128
        $region26: #{preprocess_forward.1} parent=11 // pred_check_branch
          %200 = sbr.rel (%p198) target = $region28
        $region27: #{preprocess_forward.1} parent=11 // pred_region
          _
        $region28: #{preprocess_forward.1} parent=11 // pred_fallthru
          _
      $region12: #{preprocess_forward.1} parent=5 // pred_fallthru
        _
      %p201 = scmp.lt.s32.totalorder %s18, 2
      // Predicated region
      $region29: #{preprocess_forward.1} parent=5 // pred_check
        %p202 = pneg %p201
      $region30: #{preprocess_forward.1} parent=5 // pred_check_branch
        %204 = sbr.rel (%p202) target = $region32
      $region31: #{preprocess_forward.1} parent=5 // pred_region
        // Predicated region
        $region33: #{preprocess_forward.1} parent=31 // pred_check
          %p205 = pneg %p38
        $region34: #{preprocess_forward.1} parent=31 // pred_check_branch
          %207 = sbr.rel (%p205) target = $region36
        $region35: #{preprocess_forward.1} parent=31 // pred_region
          %s208 = sand.u32 %s28, 1
          %s209 = scalar_lea.sflag [#allocation3], %s208
          %s210 = sand.u32 %s28, 1
          %s211 = smul.addr %s210, 8
          %s212 = scalar_lea.vmem [#allocation2], %s211
          %s214 = ssub.s32 128, 128
          %215 = vsyncadd %s209, %s214
          %s216 = smul.addr %s18, 128
          %s217 = scalar_lea.hbm %s0, %s216
          %s219 = sshll.u32 %s212, 4
          %s220 = int_to_ptr.vmem [resolvable:$true] %s219
          %222 = dma.hbm_to_vmem [thread:$0]  %s217, 128, %s220, %s209
        $region36: #{preprocess_forward.1} parent=31 // pred_fallthru
          _
      $region32: #{preprocess_forward.1} parent=5 // pred_fallthru
        _
      %p223 = scmp.le.s32.totalorder 1, %s18
      %p224 = scmp.lt.s32.totalorder %s18, 3
      %p225 = pnand %p223, %p224
      %p226 = pneg %p225
      // Predicated region
      $region37: #{preprocess_forward.1} parent=5 // pred_check
        _
      $region38: #{preprocess_forward.1} parent=5 // pred_check_branch
        %228 = sbr.rel (%p225) target = $region40
      $region39: #{preprocess_forward.1} parent=5 // pred_region
        %s229 = ssub.s32 %s18, 1
        %s230 = sand.u32 %s31, 1
        %s231 = scalar_lea.sflag [#allocation3], %s230
        %s232 = sand.u32 %s31, 1
        %s233 = smul.addr %s232, 8
        %s234 = scalar_lea.vmem [#allocation2], %s233
        // Predicated region
        $region41: #{preprocess_forward.1} parent=39 // pred_check
          %p235 = pneg %p44
        $region42: #{preprocess_forward.1} parent=39 // pred_check_branch
          %237 = sbr.rel (%p235) target = $region44
        $region43: #{preprocess_forward.1} parent=39 // pred_region
          %238 = dma.done %s231, 128
        $region44: #{preprocess_forward.1} parent=39 // pred_fallthru
          _
        // Predicated region
        $region45: #{preprocess_forward.1} parent=39 // pred_check
          %p239 = pneg %p65
        $region46: #{preprocess_forward.1} parent=39 // pred_check_branch
          %241 = sbr.rel (%p239) target = $region48
        $region47: #{preprocess_forward.1} parent=39 // pred_region
          %242 = dma.done [#allocation6], 512
        $region48: #{preprocess_forward.1} parent=39 // pred_fallthru
          _
        // Predicated region
        $region49: #{preprocess_forward.1} parent=39 // pred_check
          %p243 = pneg %p107
        $region50: #{preprocess_forward.1} parent=39 // pred_check_branch
          %245 = sbr.rel (%p243) target = $region52
        $region51: #{preprocess_forward.1} parent=39 // pred_region
          %246 = dma.done [#allocation6], 1024
        $region52: #{preprocess_forward.1} parent=39 // pred_fallthru
          _
        %s247 = sand.u32 %s31, 1
        %s248 = scalar_lea.sflag [#allocation3], %s247
        %s249 = sand.u32 %s31, 1
        %s250 = smul.addr %s249, 8
        %s251 = scalar_lea.vmem [#allocation2], %s250
        %p252 = pneg %p44
        %p253 = pneg %p41
        %p254 = pneg %p65
        %p255 = pneg %p62
        %p256 = pneg %p86
        %p257 = pneg %p83
        %p258 = pneg %p107
        %p259 = pneg %p104
        %p260 = pneg %p128
        %p261 = pneg %p125
        %p262 = pneg %p154
        %p263 = pneg %p151
        %s264 = sand.u32 %s141, 1
        %s265 = scalar_lea.sflag [#allocation4], %s264
        %s266 = sand.u32 %s141, 1
        %s267 = smul.addr %s266, 8
        %s268 = scalar_lea.vmem [#allocation8], %s267
        %v269 = vld [vmem:[%s234] sm:$0xff]
        %v270 = vld [vmem:[#allocation5] sm:$0xff]
        %v271 = vld [vmem:[#allocation5 + $0x8] sm:$0xff]
        %v272 = vld [vmem:[#allocation5 + $0x10] sm:$0xff]
        %v273 = vld [vmem:[#allocation5 + $0x18] sm:$0xff]
        %v274 = vld [vmem:[%s2] sm:$0x1]
        %v276 = vlaneseq
        %v277 = vshrl.u32 %v276, 7
        %v278 = vsub.s32 0, %v277
        %v279 = vrot.slane %v274, %v278
        %vm281 = vcmask 261120
        %v283 = vsel %vm281, %v269, 0
        %285 = vmatprep.subr.mxu0 0.0
        %286 = vmatpush1.msra.mxu0 0.0
        %287 = vmatprep.subr.mxu0 0.0
        %288 = vmatpush1.msra.mxu0 0.0
        %289 = vmatprep.subr.mxu0 0.0
        %290 = vmatpush1.msra.mxu0 0.0
        %291 = vmatprep.subr.mxu0 0.0
        %292 = vmatpush1.msra.mxu0 0.0
        %293 = vmatprep.subr.mxu0 0.0
        %294 = vmatpush1.msra.mxu0 0.0
        %295 = vmatprep.subr.mxu0 0.0
        %296 = vmatpush1.msra.mxu0 0.0
        %297 = vmatprep.subr.mxu0 0.0
        %298 = vmatpush1.msra.mxu0 0.0
        %299 = vmatprep.subr.mxu0 0.0
        %300 = vmatpush1.msra.mxu0 0.0
        %301 = vmatprep.subr.mxu0 0.0
        %302 = vmatpush1.msra.mxu0 0.0
        %303 = vmatprep.subr.mxu0 0.0
        %304 = vmatpush1.msra.mxu0 0.0
        %305 = vmatprep.subr.mxu0 0.0
        %306 = vmatpush1.msra.mxu0 0.0
        %307 = vmatprep.subr.mxu0 0.0
        %308 = vmatpush1.msra.mxu0 0.0
        %309 = vmatprep.subr.mxu0 0.0
        %v310 = vand.u32 %v273, 4294901760
        %311 = vmatpush1.msra.mxu0 %v310
        %312 = vmatprep.subr.mxu0 0.0
        %v313 = vand.u32 %v272, 4294901760
        %314 = vmatpush1.msra.mxu0 %v313
        %315 = vmatprep.subr.mxu0 0.0
        %v316 = vand.u32 %v271, 4294901760
        %317 = vmatpush1.msra.mxu0 %v316
        %318 = vmatprep.subr.mxu0 0.0
        %v319 = vand.u32 %v270, 4294901760
        %320 = vmatpush1.msra.mxu0 %v319
        %321 = vmatprep.subr.mxu0 0.0
        %322 = vmatpush2.msra.mxu0 0.0
        %323 = vmatprep.subr.mxu0 0.0
        %324 = vmatpush2.msra.mxu0 0.0
        %325 = vmatprep.subr.mxu0 0.0
        %326 = vmatpush2.msra.mxu0 0.0
        %327 = vmatprep.subr.mxu0 0.0
        %328 = vmatpush2.msra.mxu0 0.0
        %329 = vmatprep.subr.mxu0 0.0
        %330 = vmatpush2.msra.mxu0 0.0
        %331 = vmatprep.subr.mxu0 0.0
        %332 = vmatpush2.msra.mxu0 0.0
        %333 = vmatprep.subr.mxu0 0.0
        %334 = vmatpush2.msra.mxu0 0.0
        %335 = vmatprep.subr.mxu0 0.0
        %336 = vmatpush2.msra.mxu0 0.0
        %337 = vmatprep.subr.mxu0 0.0
        %338 = vmatpush2.msra.mxu0 0.0
        %339 = vmatprep.subr.mxu0 0.0
        %340 = vmatpush2.msra.mxu0 0.0
        %341 = vmatprep.subr.mxu0 0.0
        %342 = vmatpush2.msra.mxu0 0.0
        %343 = vmatprep.subr.mxu0 0.0
        %344 = vmatpush2.msra.mxu0 0.0
        %345 = vmatprep.subr.mxu0 0.0
        %346 = vmatpush2.msra.mxu0 0.0
        %347 = vmatprep.subr.mxu0 0.0
        %348 = vmatpush2.msra.mxu0 0.0
        %349 = vmatprep.subr.mxu0 0.0
        %350 = vmatpush2.msra.mxu0 0.0
        %351 = vmatprep.subr.mxu0 0.0
        %352 = vmatpush2.msra.mxu0 0.0
        %353 = vmatprep.mubr.f32.mxu0 0.0
        %v354 = vand.u32 %v283, 4294901760
        %v355 = vsub.f32 %v283, %v354
        %v356 = vand.u32 %v355, 4294901760
        %v357 = vsub.f32 %v355, %v356
        %v358 = vand.u32 %v357, 4294901760
        %359 = vmatmul.mubr.f32.gmra.mxu0 %v358
        %v360 = vpop.f32.mrf.mxu0
        %v361 = vadd.f32 %v279, %v360
        %v362 = vpop.f32.mrf.mxu0
        %363 = vdwg.mxu0
        %364 = vmatprep.subr.mxu0 0.0
        %365 = vmatpush1.msra.mxu0 0.0
        %366 = vmatprep.subr.mxu0 0.0
        %367 = vmatpush1.msra.mxu0 0.0
        %368 = vmatprep.subr.mxu0 0.0
        %369 = vmatpush1.msra.mxu0 0.0
        %370 = vmatprep.subr.mxu0 0.0
        %371 = vmatpush1.msra.mxu0 0.0
        %372 = vmatprep.subr.mxu0 0.0
        %373 = vmatpush1.msra.mxu0 0.0
        %374 = vmatprep.subr.mxu0 0.0
        %375 = vmatpush1.msra.mxu0 0.0
        %376 = vmatprep.subr.mxu0 0.0
        %377 = vmatpush1.msra.mxu0 0.0
        %378 = vmatprep.subr.mxu0 0.0
        %379 = vmatpush1.msra.mxu0 0.0
        %380 = vmatprep.subr.mxu0 0.0
        %381 = vmatpush1.msra.mxu0 0.0
        %382 = vmatprep.subr.mxu0 0.0
        %383 = vmatpush1.msra.mxu0 0.0
        %384 = vmatprep.subr.mxu0 0.0
        %385 = vmatpush1.msra.mxu0 0.0
        %386 = vmatprep.subr.mxu0 0.0
        %387 = vmatpush1.msra.mxu0 0.0
        %388 = vmatprep.subr.mxu0 0.0
        %v389 = vand.u32 %v273, 4294901760
        %v390 = vsub.f32 %v273, %v389
        %v391 = vand.u32 %v390, 4294901760
        %v392 = vsub.f32 %v390, %v391
        %v393 = vand.u32 %v392, 4294901760
        %394 = vmatpush1.msra.mxu0 %v393
        %395 = vmatprep.subr.mxu0 0.0
        %v396 = vand.u32 %v272, 4294901760
        %v397 = vsub.f32 %v272, %v396
        %v398 = vand.u32 %v397, 4294901760
        %v399 = vsub.f32 %v397, %v398
        %v400 = vand.u32 %v399, 4294901760
        %401 = vmatpush1.msra.mxu0 %v400
        %402 = vmatprep.subr.mxu0 0.0
        %v403 = vand.u32 %v271, 4294901760
        %v404 = vsub.f32 %v271, %v403
        %v405 = vand.u32 %v404, 4294901760
        %v406 = vsub.f32 %v404, %v405
        %v407 = vand.u32 %v406, 4294901760
        %408 = vmatpush1.msra.mxu0 %v407
        %409 = vmatprep.subr.mxu0 0.0
        %v410 = vand.u32 %v270, 4294901760
        %v411 = vsub.f32 %v270, %v410
        %v412 = vand.u32 %v411, 4294901760
        %v413 = vsub.f32 %v411, %v412
        %v414 = vand.u32 %v413, 4294901760
        %415 = vmatpush1.msra.mxu0 %v414
        %416 = vmatprep.subr.mxu0 0.0
        %417 = vmatpush2.msra.mxu0 0.0
        %418 = vmatprep.subr.mxu0 0.0
        %419 = vmatpush2.msra.mxu0 0.0
        %420 = vmatprep.subr.mxu0 0.0
        %421 = vmatpush2.msra.mxu0 0.0
        %422 = vmatprep.subr.mxu0 0.0
        %423 = vmatpush2.msra.mxu0 0.0
        %424 = vmatprep.subr.mxu0 0.0
        %425 = vmatpush2.msra.mxu0 0.0
        %426 = vmatprep.subr.mxu0 0.0
        %427 = vmatpush2.msra.mxu0 0.0
        %428 = vmatprep.subr.mxu0 0.0
        %429 = vmatpush2.msra.mxu0 0.0
        %430 = vmatprep.subr.mxu0 0.0
        %431 = vmatpush2.msra.mxu0 0.0
        %432 = vmatprep.subr.mxu0 0.0
        %433 = vmatpush2.msra.mxu0 0.0
        %434 = vmatprep.subr.mxu0 0.0
        %435 = vmatpush2.msra.mxu0 0.0
        %436 = vmatprep.subr.mxu0 0.0
        %437 = vmatpush2.msra.mxu0 0.0
        %438 = vmatprep.subr.mxu0 0.0
        %439 = vmatpush2.msra.mxu0 0.0
        %440 = vmatprep.subr.mxu0 0.0
        %441 = vmatpush2.msra.mxu0 0.0
        %442 = vmatprep.subr.mxu0 0.0
        %443 = vmatpush2.msra.mxu0 0.0
        %444 = vmatprep.subr.mxu0 0.0
        %445 = vmatpush2.msra.mxu0 0.0
        %446 = vmatprep.subr.mxu0 0.0
        %447 = vmatpush2.msra.mxu0 0.0
        %448 = vmatprep.mubr.f32.mxu0 0.0
        %v449 = vand.u32 %v283, 4294901760
        %450 = vmatmul.mubr.f32.gmra.mxu0 %v449
        %v451 = vpop.f32.mrf.mxu0
        %v452 = vadd.f32 %v361, %v451
        %v453 = vpop.f32.mrf.mxu0
        %454 = vdwg.mxu0
        %455 = vmatprep.subr.mxu0 0.0
        %456 = vmatpush1.msra.mxu0 0.0
        %457 = vmatprep.subr.mxu0 0.0
        %458 = vmatpush1.msra.mxu0 0.0
        %459 = vmatprep.subr.mxu0 0.0
        %460 = vmatpush1.msra.mxu0 0.0
        %461 = vmatprep.subr.mxu0 0.0
        %462 = vmatpush1.msra.mxu0 0.0
        %463 = vmatprep.subr.mxu0 0.0
        %464 = vmatpush1.msra.mxu0 0.0
        %465 = vmatprep.subr.mxu0 0.0
        %466 = vmatpush1.msra.mxu0 0.0
        %467 = vmatprep.subr.mxu0 0.0
        %468 = vmatpush1.msra.mxu0 0.0
        %469 = vmatprep.subr.mxu0 0.0
        %470 = vmatpush1.msra.mxu0 0.0
        %471 = vmatprep.subr.mxu0 0.0
        %472 = vmatpush1.msra.mxu0 0.0
        %473 = vmatprep.subr.mxu0 0.0
        %474 = vmatpush1.msra.mxu0 0.0
        %475 = vmatprep.subr.mxu0 0.0
        %476 = vmatpush1.msra.mxu0 0.0
        %477 = vmatprep.subr.mxu0 0.0
        %478 = vmatpush1.msra.mxu0 0.0
        %479 = vmatprep.subr.mxu0 0.0
        %v480 = vand.u32 %v273, 4294901760
        %v481 = vsub.f32 %v273, %v480
        %482 = vmatpush1.msra.mxu0 %v481
        %483 = vmatprep.subr.mxu0 0.0
        %v484 = vand.u32 %v272, 4294901760
        %v485 = vsub.f32 %v272, %v484
        %486 = vmatpush1.msra.mxu0 %v485
        %487 = vmatprep.subr.mxu0 0.0
        %v488 = vand.u32 %v271, 4294901760
        %v489 = vsub.f32 %v271, %v488
        %490 = vmatpush1.msra.mxu0 %v489
        %491 = vmatprep.subr.mxu0 0.0
        %v492 = vand.u32 %v270, 4294901760
        %v493 = vsub.f32 %v270, %v492
        %494 = vmatpush1.msra.mxu0 %v493
        %495 = vmatprep.subr.mxu0 0.0
        %496 = vmatpush2.msra.mxu0 0.0
        %497 = vmatprep.subr.mxu0 0.0
        %498 = vmatpush2.msra.mxu0 0.0
        %499 = vmatprep.subr.mxu0 0.0
        %500 = vmatpush2.msra.mxu0 0.0
        %501 = vmatprep.subr.mxu0 0.0
        %502 = vmatpush2.msra.mxu0 0.0
        %503 = vmatprep.subr.mxu0 0.0
        %504 = vmatpush2.msra.mxu0 0.0
        %505 = vmatprep.subr.mxu0 0.0
        %506 = vmatpush2.msra.mxu0 0.0
        %507 = vmatprep.subr.mxu0 0.0
        %508 = vmatpush2.msra.mxu0 0.0
        %509 = vmatprep.subr.mxu0 0.0
        %510 = vmatpush2.msra.mxu0 0.0
        %511 = vmatprep.subr.mxu0 0.0
        %512 = vmatpush2.msra.mxu0 0.0
        %513 = vmatprep.subr.mxu0 0.0
        %514 = vmatpush2.msra.mxu0 0.0
        %515 = vmatprep.subr.mxu0 0.0
        %516 = vmatpush2.msra.mxu0 0.0
        %517 = vmatprep.subr.mxu0 0.0
        %518 = vmatpush2.msra.mxu0 0.0
        %519 = vmatprep.subr.mxu0 0.0
        %520 = vmatpush2.msra.mxu0 0.0
        %521 = vmatprep.subr.mxu0 0.0
        %522 = vmatpush2.msra.mxu0 0.0
        %523 = vmatprep.subr.mxu0 0.0
        %524 = vmatpush2.msra.mxu0 0.0
        %525 = vmatprep.subr.mxu0 0.0
        %526 = vmatpush2.msra.mxu0 0.0
        %527 = vmatprep.mubr.f32.mxu0 0.0
        %v528 = vand.u32 %v283, 4294901760
        %v529 = vsub.f32 %v283, %v528
        %530 = vmatmul.mubr.f32.gmra.mxu0 %v529
        %v531 = vpop.f32.mrf.mxu0
        %v532 = vadd.f32 %v452, %v531
        %v533 = vpop.f32.mrf.mxu0
        %534 = vdwg.mxu0
        %535 = vmatprep.subr.mxu0 0.0
        %536 = vmatpush1.msra.mxu0 0.0
        %537 = vmatprep.subr.mxu0 0.0
        %538 = vmatpush1.msra.mxu0 0.0
        %539 = vmatprep.subr.mxu0 0.0
        %540 = vmatpush1.msra.mxu0 0.0
        %541 = vmatprep.subr.mxu0 0.0
        %542 = vmatpush1.msra.mxu0 0.0
        %543 = vmatprep.subr.mxu0 0.0
        %544 = vmatpush1.msra.mxu0 0.0
        %545 = vmatprep.subr.mxu0 0.0
        %546 = vmatpush1.msra.mxu0 0.0
        %547 = vmatprep.subr.mxu0 0.0
        %548 = vmatpush1.msra.mxu0 0.0
        %549 = vmatprep.subr.mxu0 0.0
        %550 = vmatpush1.msra.mxu0 0.0
        %551 = vmatprep.subr.mxu0 0.0
        %552 = vmatpush1.msra.mxu0 0.0
        %553 = vmatprep.subr.mxu0 0.0
        %554 = vmatpush1.msra.mxu0 0.0
        %555 = vmatprep.subr.mxu0 0.0
        %556 = vmatpush1.msra.mxu0 0.0
        %557 = vmatprep.subr.mxu0 0.0
        %558 = vmatpush1.msra.mxu0 0.0
        %559 = vmatprep.subr.mxu0 0.0
        %v560 = vand.u32 %v273, 4294901760
        %561 = vmatpush1.msra.mxu0 %v560
        %562 = vmatprep.subr.mxu0 0.0
        %v563 = vand.u32 %v272, 4294901760
        %564 = vmatpush1.msra.mxu0 %v563
        %565 = vmatprep.subr.mxu0 0.0
        %v566 = vand.u32 %v271, 4294901760
        %567 = vmatpush1.msra.mxu0 %v566
        %568 = vmatprep.subr.mxu0 0.0
        %v569 = vand.u32 %v270, 4294901760
        %570 = vmatpush1.msra.mxu0 %v569
        %571 = vmatprep.subr.mxu0 0.0
        %572 = vmatpush2.msra.mxu0 0.0
        %573 = vmatprep.subr.mxu0 0.0
        %574 = vmatpush2.msra.mxu0 0.0
        %575 = vmatprep.subr.mxu0 0.0
        %576 = vmatpush2.msra.mxu0 0.0
        %577 = vmatprep.subr.mxu0 0.0
        %578 = vmatpush2.msra.mxu0 0.0
        %579 = vmatprep.subr.mxu0 0.0
        %580 = vmatpush2.msra.mxu0 0.0
        %581 = vmatprep.subr.mxu0 0.0
        %582 = vmatpush2.msra.mxu0 0.0
        %583 = vmatprep.subr.mxu0 0.0
        %584 = vmatpush2.msra.mxu0 0.0
        %585 = vmatprep.subr.mxu0 0.0
        %586 = vmatpush2.msra.mxu0 0.0
        %587 = vmatprep.subr.mxu0 0.0
        %588 = vmatpush2.msra.mxu0 0.0
        %589 = vmatprep.subr.mxu0 0.0
        %590 = vmatpush2.msra.mxu0 0.0
        %591 = vmatprep.subr.mxu0 0.0
        %592 = vmatpush2.msra.mxu0 0.0
        %593 = vmatprep.subr.mxu0 0.0
        %594 = vmatpush2.msra.mxu0 0.0
        %595 = vmatprep.subr.mxu0 0.0
        %596 = vmatpush2.msra.mxu0 0.0
        %597 = vmatprep.subr.mxu0 0.0
        %598 = vmatpush2.msra.mxu0 0.0
        %599 = vmatprep.subr.mxu0 0.0
        %600 = vmatpush2.msra.mxu0 0.0
        %601 = vmatprep.subr.mxu0 0.0
        %602 = vmatpush2.msra.mxu0 0.0
        %603 = vmatprep.mubr.f32.mxu0 0.0
        %v604 = vand.u32 %v283, 4294901760
        %v605 = vsub.f32 %v283, %v604
        %v606 = vand.u32 %v605, 4294901760
        %607 = vmatmul.mubr.f32.gmra.mxu0 %v606
        %v608 = vpop.f32.mrf.mxu0
        %v609 = vadd.f32 %v532, %v608
        %v610 = vpop.f32.mrf.mxu0
        %611 = vdwg.mxu0
        %612 = vmatprep.subr.mxu0 0.0
        %613 = vmatpush1.msra.mxu0 0.0
        %614 = vmatprep.subr.mxu0 0.0
        %615 = vmatpush1.msra.mxu0 0.0
        %616 = vmatprep.subr.mxu0 0.0
        %617 = vmatpush1.msra.mxu0 0.0
        %618 = vmatprep.subr.mxu0 0.0
        %619 = vmatpush1.msra.mxu0 0.0
        %620 = vmatprep.subr.mxu0 0.0
        %621 = vmatpush1.msra.mxu0 0.0
        %622 = vmatprep.subr.mxu0 0.0
        %623 = vmatpush1.msra.mxu0 0.0
        %624 = vmatprep.subr.mxu0 0.0
        %625 = vmatpush1.msra.mxu0 0.0
        %626 = vmatprep.subr.mxu0 0.0
        %627 = vmatpush1.msra.mxu0 0.0
        %628 = vmatprep.subr.mxu0 0.0
        %629 = vmatpush1.msra.mxu0 0.0
        %630 = vmatprep.subr.mxu0 0.0
        %631 = vmatpush1.msra.mxu0 0.0
        %632 = vmatprep.subr.mxu0 0.0
        %633 = vmatpush1.msra.mxu0 0.0
        %634 = vmatprep.subr.mxu0 0.0
        %635 = vmatpush1.msra.mxu0 0.0
        %636 = vmatprep.subr.mxu0 0.0
        %v637 = vand.u32 %v273, 4294901760
        %v638 = vsub.f32 %v273, %v637
        %v639 = vand.u32 %v638, 4294901760
        %640 = vmatpush1.msra.mxu0 %v639
        %641 = vmatprep.subr.mxu0 0.0
        %v642 = vand.u32 %v272, 4294901760
        %v643 = vsub.f32 %v272, %v642
        %v644 = vand.u32 %v643, 4294901760
        %645 = vmatpush1.msra.mxu0 %v644
        %646 = vmatprep.subr.mxu0 0.0
        %v647 = vand.u32 %v271, 4294901760
        %v648 = vsub.f32 %v271, %v647
        %v649 = vand.u32 %v648, 4294901760
        %650 = vmatpush1.msra.mxu0 %v649
        %651 = vmatprep.subr.mxu0 0.0
        %v652 = vand.u32 %v270, 4294901760
        %v653 = vsub.f32 %v270, %v652
        %v654 = vand.u32 %v653, 4294901760
        %655 = vmatpush1.msra.mxu0 %v654
        %656 = vmatprep.subr.mxu0 0.0
        %657 = vmatpush2.msra.mxu0 0.0
        %658 = vmatprep.subr.mxu0 0.0
        %659 = vmatpush2.msra.mxu0 0.0
        %660 = vmatprep.subr.mxu0 0.0
        %661 = vmatpush2.msra.mxu0 0.0
        %662 = vmatprep.subr.mxu0 0.0
        %663 = vmatpush2.msra.mxu0 0.0
        %664 = vmatprep.subr.mxu0 0.0
        %665 = vmatpush2.msra.mxu0 0.0
        %666 = vmatprep.subr.mxu0 0.0
        %667 = vmatpush2.msra.mxu0 0.0
        %668 = vmatprep.subr.mxu0 0.0
        %669 = vmatpush2.msra.mxu0 0.0
        %670 = vmatprep.subr.mxu0 0.0
        %671 = vmatpush2.msra.mxu0 0.0
        %672 = vmatprep.subr.mxu0 0.0
        %673 = vmatpush2.msra.mxu0 0.0
        %674 = vmatprep.subr.mxu0 0.0
        %675 = vmatpush2.msra.mxu0 0.0
        %676 = vmatprep.subr.mxu0 0.0
        %677 = vmatpush2.msra.mxu0 0.0
        %678 = vmatprep.subr.mxu0 0.0
        %679 = vmatpush2.msra.mxu0 0.0
        %680 = vmatprep.subr.mxu0 0.0
        %681 = vmatpush2.msra.mxu0 0.0
        %682 = vmatprep.subr.mxu0 0.0
        %683 = vmatpush2.msra.mxu0 0.0
        %684 = vmatprep.subr.mxu0 0.0
        %685 = vmatpush2.msra.mxu0 0.0
        %686 = vmatprep.subr.mxu0 0.0
        %687 = vmatpush2.msra.mxu0 0.0
        %688 = vmatprep.mubr.f32.mxu0 0.0
        %v689 = vand.u32 %v283, 4294901760
        %690 = vmatmul.mubr.f32.gmra.mxu0 %v689
        %v691 = vpop.f32.mrf.mxu0
        %v692 = vadd.f32 %v609, %v691
        %v693 = vpop.f32.mrf.mxu0
        %694 = vdwg.mxu0
        %695 = vmatprep.subr.mxu0 0.0
        %696 = vmatpush1.msra.mxu0 0.0
        %697 = vmatprep.subr.mxu0 0.0
        %698 = vmatpush1.msra.mxu0 0.0
        %699 = vmatprep.subr.mxu0 0.0
        %700 = vmatpush1.msra.mxu0 0.0
        %701 = vmatprep.subr.mxu0 0.0
        %702 = vmatpush1.msra.mxu0 0.0
        %703 = vmatprep.subr.mxu0 0.0
        %704 = vmatpush1.msra.mxu0 0.0
        %705 = vmatprep.subr.mxu0 0.0
        %706 = vmatpush1.msra.mxu0 0.0
        %707 = vmatprep.subr.mxu0 0.0
        %708 = vmatpush1.msra.mxu0 0.0
        %709 = vmatprep.subr.mxu0 0.0
        %710 = vmatpush1.msra.mxu0 0.0
        %711 = vmatprep.subr.mxu0 0.0
        %712 = vmatpush1.msra.mxu0 0.0
        %713 = vmatprep.subr.mxu0 0.0
        %714 = vmatpush1.msra.mxu0 0.0
        %715 = vmatprep.subr.mxu0 0.0
        %716 = vmatpush1.msra.mxu0 0.0
        %717 = vmatprep.subr.mxu0 0.0
        %718 = vmatpush1.msra.mxu0 0.0
        %719 = vmatprep.subr.mxu0 0.0
        %v720 = vand.u32 %v273, 4294901760
        %721 = vmatpush1.msra.mxu0 %v720
        %722 = vmatprep.subr.mxu0 0.0
        %v723 = vand.u32 %v272, 4294901760
        %724 = vmatpush1.msra.mxu0 %v723
        %725 = vmatprep.subr.mxu0 0.0
        %v726 = vand.u32 %v271, 4294901760
        %727 = vmatpush1.msra.mxu0 %v726
        %728 = vmatprep.subr.mxu0 0.0
        %v729 = vand.u32 %v270, 4294901760
        %730 = vmatpush1.msra.mxu0 %v729
        %731 = vmatprep.subr.mxu0 0.0
        %732 = vmatpush2.msra.mxu0 0.0
        %733 = vmatprep.subr.mxu0 0.0
        %734 = vmatpush2.msra.mxu0 0.0
        %735 = vmatprep.subr.mxu0 0.0
        %736 = vmatpush2.msra.mxu0 0.0
        %737 = vmatprep.subr.mxu0 0.0
        %738 = vmatpush2.msra.mxu0 0.0
        %739 = vmatprep.subr.mxu0 0.0
        %740 = vmatpush2.msra.mxu0 0.0
        %741 = vmatprep.subr.mxu0 0.0
        %742 = vmatpush2.msra.mxu0 0.0
        %743 = vmatprep.subr.mxu0 0.0
        %744 = vmatpush2.msra.mxu0 0.0
        %745 = vmatprep.subr.mxu0 0.0
        %746 = vmatpush2.msra.mxu0 0.0
        %747 = vmatprep.subr.mxu0 0.0
        %748 = vmatpush2.msra.mxu0 0.0
        %749 = vmatprep.subr.mxu0 0.0
        %750 = vmatpush2.msra.mxu0 0.0
        %751 = vmatprep.subr.mxu0 0.0
        %752 = vmatpush2.msra.mxu0 0.0
        %753 = vmatprep.subr.mxu0 0.0
        %754 = vmatpush2.msra.mxu0 0.0
        %755 = vmatprep.subr.mxu0 0.0
        %756 = vmatpush2.msra.mxu0 0.0
        %757 = vmatprep.subr.mxu0 0.0
        %758 = vmatpush2.msra.mxu0 0.0
        %759 = vmatprep.subr.mxu0 0.0
        %760 = vmatpush2.msra.mxu0 0.0
        %761 = vmatprep.subr.mxu0 0.0
        %762 = vmatpush2.msra.mxu0 0.0
        %763 = vmatprep.mubr.f32.mxu0 0.0
        %v764 = vand.u32 %v283, 4294901760
        %765 = vmatmul.mubr.f32.gmra.mxu0 %v764
        %v766 = vpop.f32.mrf.mxu0
        %v767 = vadd.f32 %v692, %v766
        %v768 = vpop.f32.mrf.mxu0
        %769 = vdwg.mxu0
        %v770 = vmax.f32 %v767, 0.0
        %v771 = vld [vmem:[#allocation7] sm:$0xff]
        %v772 = vld [vmem:[#allocation7 + $0x8] sm:$0xff]
        %v773 = vld [vmem:[#allocation7 + $0x10] sm:$0xff]
        %v774 = vld [vmem:[#allocation7 + $0x18] sm:$0xff]
        %v775 = vld [vmem:[#allocation7 + $0x20] sm:$0xff]
        %v776 = vld [vmem:[#allocation7 + $0x28] sm:$0xff]
        %v777 = vld [vmem:[#allocation7 + $0x30] sm:$0xff]
        %v778 = vld [vmem:[#allocation7 + $0x38] sm:$0xff]
        %v779 = vld [vmem:[%s4] sm:$0x1]
        %v781 = vlaneseq
        %v782 = vshrl.u32 %v781, 7
        %v783 = vsub.s32 0, %v782
        %v784 = vrot.slane %v779, %v783
        %vm786 = vcmask 523264
        %v788 = vsel %vm786, %v770, 0
        %790 = vmatprep.subr.mxu0 0.0
        %791 = vmatpush1.msra.mxu0 0.0
        %792 = vmatprep.subr.mxu0 0.0
        %793 = vmatpush1.msra.mxu0 0.0
        %794 = vmatprep.subr.mxu0 0.0
        %795 = vmatpush1.msra.mxu0 0.0
        %796 = vmatprep.subr.mxu0 0.0
        %797 = vmatpush1.msra.mxu0 0.0
        %798 = vmatprep.subr.mxu0 0.0
        %799 = vmatpush1.msra.mxu0 0.0
        %800 = vmatprep.subr.mxu0 0.0
        %801 = vmatpush1.msra.mxu0 0.0
        %802 = vmatprep.subr.mxu0 0.0
        %803 = vmatpush1.msra.mxu0 0.0
        %804 = vmatprep.subr.mxu0 0.0
        %805 = vmatpush1.msra.mxu0 0.0
        %806 = vmatprep.subr.mxu0 0.0
        %v807 = vand.u32 %v778, 4294901760
        %808 = vmatpush1.msra.mxu0 %v807
        %809 = vmatprep.subr.mxu0 0.0
        %v810 = vand.u32 %v777, 4294901760
        %811 = vmatpush1.msra.mxu0 %v810
        %812 = vmatprep.subr.mxu0 0.0
        %v813 = vand.u32 %v776, 4294901760
        %814 = vmatpush1.msra.mxu0 %v813
        %815 = vmatprep.subr.mxu0 0.0
        %v816 = vand.u32 %v775, 4294901760
        %817 = vmatpush1.msra.mxu0 %v816
        %818 = vmatprep.subr.mxu0 0.0
        %v819 = vand.u32 %v774, 4294901760
        %820 = vmatpush1.msra.mxu0 %v819
        %821 = vmatprep.subr.mxu0 0.0
        %v822 = vand.u32 %v773, 4294901760
        %823 = vmatpush1.msra.mxu0 %v822
        %824 = vmatprep.subr.mxu0 0.0
        %v825 = vand.u32 %v772, 4294901760
        %826 = vmatpush1.msra.mxu0 %v825
        %827 = vmatprep.subr.mxu0 0.0
        %v828 = vand.u32 %v771, 4294901760
        %829 = vmatpush1.msra.mxu0 %v828
        %830 = vmatprep.subr.mxu0 0.0
        %831 = vmatpush2.msra.mxu0 0.0
        %832 = vmatprep.subr.mxu0 0.0
        %833 = vmatpush2.msra.mxu0 0.0
        %834 = vmatprep.subr.mxu0 0.0
        %835 = vmatpush2.msra.mxu0 0.0
        %836 = vmatprep.subr.mxu0 0.0
        %837 = vmatpush2.msra.mxu0 0.0
        %838 = vmatprep.subr.mxu0 0.0
        %839 = vmatpush2.msra.mxu0 0.0
        %840 = vmatprep.subr.mxu0 0.0
        %841 = vmatpush2.msra.mxu0 0.0
        %842 = vmatprep.subr.mxu0 0.0
        %843 = vmatpush2.msra.mxu0 0.0
        %844 = vmatprep.subr.mxu0 0.0
        %845 = vmatpush2.msra.mxu0 0.0
        %846 = vmatprep.subr.mxu0 0.0
        %847 = vmatpush2.msra.mxu0 0.0
        %848 = vmatprep.subr.mxu0 0.0
        %849 = vmatpush2.msra.mxu0 0.0
        %850 = vmatprep.subr.mxu0 0.0
        %851 = vmatpush2.msra.mxu0 0.0
        %852 = vmatprep.subr.mxu0 0.0
        %853 = vmatpush2.msra.mxu0 0.0
        %854 = vmatprep.subr.mxu0 0.0
        %855 = vmatpush2.msra.mxu0 0.0
        %856 = vmatprep.subr.mxu0 0.0
        %857 = vmatpush2.msra.mxu0 0.0
        %858 = vmatprep.subr.mxu0 0.0
        %859 = vmatpush2.msra.mxu0 0.0
        %860 = vmatprep.subr.mxu0 0.0
        %861 = vmatpush2.msra.mxu0 0.0
        %862 = vmatprep.mubr.f32.mxu0 0.0
        %v863 = vand.u32 %v788, 4294901760
        %v864 = vsub.f32 %v788, %v863
        %v865 = vand.u32 %v864, 4294901760
        %v866 = vsub.f32 %v864, %v865
        %v867 = vand.u32 %v866, 4294901760
        %868 = vmatmul.mubr.f32.gmra.mxu0 %v867
        %v869 = vpop.f32.mrf.mxu0
        %v870 = vadd.f32 %v784, %v869
        %v871 = vpop.f32.mrf.mxu0
        %872 = vdwg.mxu0
        %873 = vmatprep.subr.mxu0 0.0
        %874 = vmatpush1.msra.mxu0 0.0
        %875 = vmatprep.subr.mxu0 0.0
        %876 = vmatpush1.msra.mxu0 0.0
        %877 = vmatprep.subr.mxu0 0.0
        %878 = vmatpush1.msra.mxu0 0.0
        %879 = vmatprep.subr.mxu0 0.0
        %880 = vmatpush1.msra.mxu0 0.0
        %881 = vmatprep.subr.mxu0 0.0
        %882 = vmatpush1.msra.mxu0 0.0
        %883 = vmatprep.subr.mxu0 0.0
        %884 = vmatpush1.msra.mxu0 0.0
        %885 = vmatprep.subr.mxu0 0.0
        %886 = vmatpush1.msra.mxu0 0.0
        %887 = vmatprep.subr.mxu0 0.0
        %888 = vmatpush1.msra.mxu0 0.0
        %889 = vmatprep.subr.mxu0 0.0
        %v890 = vand.u32 %v778, 4294901760
        %v891 = vsub.f32 %v778, %v890
        %v892 = vand.u32 %v891, 4294901760
        %v893 = vsub.f32 %v891, %v892
        %v894 = vand.u32 %v893, 4294901760
        %895 = vmatpush1.msra.mxu0 %v894
        %896 = vmatprep.subr.mxu0 0.0
        %v897 = vand.u32 %v777, 4294901760
        %v898 = vsub.f32 %v777, %v897
        %v899 = vand.u32 %v898, 4294901760
        %v900 = vsub.f32 %v898, %v899
        %v901 = vand.u32 %v900, 4294901760
        %902 = vmatpush1.msra.mxu0 %v901
        %903 = vmatprep.subr.mxu0 0.0
        %v904 = vand.u32 %v776, 4294901760
        %v905 = vsub.f32 %v776, %v904
        %v906 = vand.u32 %v905, 4294901760
        %v907 = vsub.f32 %v905, %v906
        %v908 = vand.u32 %v907, 4294901760
        %909 = vmatpush1.msra.mxu0 %v908
        %910 = vmatprep.subr.mxu0 0.0
        %v911 = vand.u32 %v775, 4294901760
        %v912 = vsub.f32 %v775, %v911
        %v913 = vand.u32 %v912, 4294901760
        %v914 = vsub.f32 %v912, %v913
        %v915 = vand.u32 %v914, 4294901760
        %916 = vmatpush1.msra.mxu0 %v915
        %917 = vmatprep.subr.mxu0 0.0
        %v918 = vand.u32 %v774, 4294901760
        %v919 = vsub.f32 %v774, %v918
        %v920 = vand.u32 %v919, 4294901760
        %v921 = vsub.f32 %v919, %v920
        %v922 = vand.u32 %v921, 4294901760
        %923 = vmatpush1.msra.mxu0 %v922
        %924 = vmatprep.subr.mxu0 0.0
        %v925 = vand.u32 %v773, 4294901760
        %v926 = vsub.f32 %v773, %v925
        %v927 = vand.u32 %v926, 4294901760
        %v928 = vsub.f32 %v926, %v927
        %v929 = vand.u32 %v928, 4294901760
        %930 = vmatpush1.msra.mxu0 %v929
        %931 = vmatprep.subr.mxu0 0.0
        %v932 = vand.u32 %v772, 4294901760
        %v933 = vsub.f32 %v772, %v932
        %v934 = vand.u32 %v933, 4294901760
        %v935 = vsub.f32 %v933, %v934
        %v936 = vand.u32 %v935, 4294901760
        %937 = vmatpush1.msra.mxu0 %v936
        %938 = vmatprep.subr.mxu0 0.0
        %v939 = vand.u32 %v771, 4294901760
        %v940 = vsub.f32 %v771, %v939
        %v941 = vand.u32 %v940, 4294901760
        %v942 = vsub.f32 %v940, %v941
        %v943 = vand.u32 %v942, 4294901760
        %944 = vmatpush1.msra.mxu0 %v943
        %945 = vmatprep.subr.mxu0 0.0
        %946 = vmatpush2.msra.mxu0 0.0
        %947 = vmatprep.subr.mxu0 0.0
        %948 = vmatpush2.msra.mxu0 0.0
        %949 = vmatprep.subr.mxu0 0.0
        %950 = vmatpush2.msra.mxu0 0.0
        %951 = vmatprep.subr.mxu0 0.0
        %952 = vmatpush2.msra.mxu0 0.0
        %953 = vmatprep.subr.mxu0 0.0
        %954 = vmatpush2.msra.mxu0 0.0
        %955 = vmatprep.subr.mxu0 0.0
        %956 = vmatpush2.msra.mxu0 0.0
        %957 = vmatprep.subr.mxu0 0.0
        %958 = vmatpush2.msra.mxu0 0.0
        %959 = vmatprep.subr.mxu0 0.0
        %960 = vmatpush2.msra.mxu0 0.0
        %961 = vmatprep.subr.mxu0 0.0
        %962 = vmatpush2.msra.mxu0 0.0
        %963 = vmatprep.subr.mxu0 0.0
        %964 = vmatpush2.msra.mxu0 0.0
        %965 = vmatprep.subr.mxu0 0.0
        %966 = vmatpush2.msra.mxu0 0.0
        %967 = vmatprep.subr.mxu0 0.0
        %968 = vmatpush2.msra.mxu0 0.0
        %969 = vmatprep.subr.mxu0 0.0
        %970 = vmatpush2.msra.mxu0 0.0
        %971 = vmatprep.subr.mxu0 0.0
        %972 = vmatpush2.msra.mxu0 0.0
        %973 = vmatprep.subr.mxu0 0.0
        %974 = vmatpush2.msra.mxu0 0.0
        %975 = vmatprep.subr.mxu0 0.0
        %976 = vmatpush2.msra.mxu0 0.0
        %977 = vmatprep.mubr.f32.mxu0 0.0
        %v978 = vand.u32 %v788, 4294901760
        %979 = vmatmul.mubr.f32.gmra.mxu0 %v978
        %v980 = vpop.f32.mrf.mxu0
        %v981 = vadd.f32 %v870, %v980
        %v982 = vpop.f32.mrf.mxu0
        %983 = vdwg.mxu0
        %984 = vmatprep.subr.mxu0 0.0
        %985 = vmatpush1.msra.mxu0 0.0
        %986 = vmatprep.subr.mxu0 0.0
        %987 = vmatpush1.msra.mxu0 0.0
        %988 = vmatprep.subr.mxu0 0.0
        %989 = vmatpush1.msra.mxu0 0.0
        %990 = vmatprep.subr.mxu0 0.0
        %991 = vmatpush1.msra.mxu0 0.0
        %992 = vmatprep.subr.mxu0 0.0
        %993 = vmatpush1.msra.mxu0 0.0
        %994 = vmatprep.subr.mxu0 0.0
        %995 = vmatpush1.msra.mxu0 0.0
        %996 = vmatprep.subr.mxu0 0.0
        %997 = vmatpush1.msra.mxu0 0.0
        %998 = vmatprep.subr.mxu0 0.0
        %999 = vmatpush1.msra.mxu0 0.0
        %1000 = vmatprep.subr.mxu0 0.0
        %v1001 = vand.u32 %v778, 4294901760
        %v1002 = vsub.f32 %v778, %v1001
        %1003 = vmatpush1.msra.mxu0 %v1002
        %1004 = vmatprep.subr.mxu0 0.0
        %v1005 = vand.u32 %v777, 4294901760
        %v1006 = vsub.f32 %v777, %v1005
        %1007 = vmatpush1.msra.mxu0 %v1006
        %1008 = vmatprep.subr.mxu0 0.0
        %v1009 = vand.u32 %v776, 4294901760
        %v1010 = vsub.f32 %v776, %v1009
        %1011 = vmatpush1.msra.mxu0 %v1010
        %1012 = vmatprep.subr.mxu0 0.0
        %v1013 = vand.u32 %v775, 4294901760
        %v1014 = vsub.f32 %v775, %v1013
        %1015 = vmatpush1.msra.mxu0 %v1014
        %1016 = vmatprep.subr.mxu0 0.0
        %v1017 = vand.u32 %v774, 4294901760
        %v1018 = vsub.f32 %v774, %v1017
        %1019 = vmatpush1.msra.mxu0 %v1018
        %1020 = vmatprep.subr.mxu0 0.0
        %v1021 = vand.u32 %v773, 4294901760
        %v1022 = vsub.f32 %v773, %v1021
        %1023 = vmatpush1.msra.mxu0 %v1022
        %1024 = vmatprep.subr.mxu0 0.0
        %v1025 = vand.u32 %v772, 4294901760
        %v1026 = vsub.f32 %v772, %v1025
        %1027 = vmatpush1.msra.mxu0 %v1026
        %1028 = vmatprep.subr.mxu0 0.0
        %v1029 = vand.u32 %v771, 4294901760
        %v1030 = vsub.f32 %v771, %v1029
        %1031 = vmatpush1.msra.mxu0 %v1030
        %1032 = vmatprep.subr.mxu0 0.0
        %1033 = vmatpush2.msra.mxu0 0.0
        %1034 = vmatprep.subr.mxu0 0.0
        %1035 = vmatpush2.msra.mxu0 0.0
        %1036 = vmatprep.subr.mxu0 0.0
        %1037 = vmatpush2.msra.mxu0 0.0
        %1038 = vmatprep.subr.mxu0 0.0
        %1039 = vmatpush2.msra.mxu0 0.0
        %1040 = vmatprep.subr.mxu0 0.0
        %1041 = vmatpush2.msra.mxu0 0.0
        %1042 = vmatprep.subr.mxu0 0.0
        %1043 = vmatpush2.msra.mxu0 0.0
        %1044 = vmatprep.subr.mxu0 0.0
        %1045 = vmatpush2.msra.mxu0 0.0
        %1046 = vmatprep.subr.mxu0 0.0
        %1047 = vmatpush2.msra.mxu0 0.0
        %1048 = vmatprep.subr.mxu0 0.0
        %1049 = vmatpush2.msra.mxu0 0.0
        %1050 = vmatprep.subr.mxu0 0.0
        %1051 = vmatpush2.msra.mxu0 0.0
        %1052 = vmatprep.subr.mxu0 0.0
        %1053 = vmatpush2.msra.mxu0 0.0
        %1054 = vmatprep.subr.mxu0 0.0
        %1055 = vmatpush2.msra.mxu0 0.0
        %1056 = vmatprep.subr.mxu0 0.0
        %1057 = vmatpush2.msra.mxu0 0.0
        %1058 = vmatprep.subr.mxu0 0.0
        %1059 = vmatpush2.msra.mxu0 0.0
        %1060 = vmatprep.subr.mxu0 0.0
        %1061 = vmatpush2.msra.mxu0 0.0
        %1062 = vmatprep.subr.mxu0 0.0
        %1063 = vmatpush2.msra.mxu0 0.0
        %1064 = vmatprep.mubr.f32.mxu0 0.0
        %v1065 = vand.u32 %v788, 4294901760
        %v1066 = vsub.f32 %v788, %v1065
        %1067 = vmatmul.mubr.f32.gmra.mxu0 %v1066
        %v1068 = vpop.f32.mrf.mxu0
        %v1069 = vadd.f32 %v981, %v1068
        %v1070 = vpop.f32.mrf.mxu0
        %1071 = vdwg.mxu0
        %1072 = vmatprep.subr.mxu0 0.0
        %1073 = vmatpush1.msra.mxu0 0.0
        %1074 = vmatprep.subr.mxu0 0.0
        %1075 = vmatpush1.msra.mxu0 0.0
        %1076 = vmatprep.subr.mxu0 0.0
        %1077 = vmatpush1.msra.mxu0 0.0
        %1078 = vmatprep.subr.mxu0 0.0
        %1079 = vmatpush1.msra.mxu0 0.0
        %1080 = vmatprep.subr.mxu0 0.0
        %1081 = vmatpush1.msra.mxu0 0.0
        %1082 = vmatprep.subr.mxu0 0.0
        %1083 = vmatpush1.msra.mxu0 0.0
        %1084 = vmatprep.subr.mxu0 0.0
        %1085 = vmatpush1.msra.mxu0 0.0
        %1086 = vmatprep.subr.mxu0 0.0
        %1087 = vmatpush1.msra.mxu0 0.0
        %1088 = vmatprep.subr.mxu0 0.0
        %v1089 = vand.u32 %v778, 4294901760
        %1090 = vmatpush1.msra.mxu0 %v1089
        %1091 = vmatprep.subr.mxu0 0.0
        %v1092 = vand.u32 %v777, 4294901760
        %1093 = vmatpush1.msra.mxu0 %v1092
        %1094 = vmatprep.subr.mxu0 0.0
        %v1095 = vand.u32 %v776, 4294901760
        %1096 = vmatpush1.msra.mxu0 %v1095
        %1097 = vmatprep.subr.mxu0 0.0
        %v1098 = vand.u32 %v775, 4294901760
        %1099 = vmatpush1.msra.mxu0 %v1098
        %1100 = vmatprep.subr.mxu0 0.0
        %v1101 = vand.u32 %v774, 4294901760
        %1102 = vmatpush1.msra.mxu0 %v1101
        %1103 = vmatprep.subr.mxu0 0.0
        %v1104 = vand.u32 %v773, 4294901760
        %1105 = vmatpush1.msra.mxu0 %v1104
        %1106 = vmatprep.subr.mxu0 0.0
        %v1107 = vand.u32 %v772, 4294901760
        %1108 = vmatpush1.msra.mxu0 %v1107
        %1109 = vmatprep.subr.mxu0 0.0
        %v1110 = vand.u32 %v771, 4294901760
        %1111 = vmatpush1.msra.mxu0 %v1110
        %1112 = vmatprep.subr.mxu0 0.0
        %1113 = vmatpush2.msra.mxu0 0.0
        %1114 = vmatprep.subr.mxu0 0.0
        %1115 = vmatpush2.msra.mxu0 0.0
        %1116 = vmatprep.subr.mxu0 0.0
        %1117 = vmatpush2.msra.mxu0 0.0
        %1118 = vmatprep.subr.mxu0 0.0
        %1119 = vmatpush2.msra.mxu0 0.0
        %1120 = vmatprep.subr.mxu0 0.0
        %1121 = vmatpush2.msra.mxu0 0.0
        %1122 = vmatprep.subr.mxu0 0.0
        %1123 = vmatpush2.msra.mxu0 0.0
        %1124 = vmatprep.subr.mxu0 0.0
        %1125 = vmatpush2.msra.mxu0 0.0
        %1126 = vmatprep.subr.mxu0 0.0
        %1127 = vmatpush2.msra.mxu0 0.0
        %1128 = vmatprep.subr.mxu0 0.0
        %1129 = vmatpush2.msra.mxu0 0.0
        %1130 = vmatprep.subr.mxu0 0.0
        %1131 = vmatpush2.msra.mxu0 0.0
        %1132 = vmatprep.subr.mxu0 0.0
        %1133 = vmatpush2.msra.mxu0 0.0
        %1134 = vmatprep.subr.mxu0 0.0
        %1135 = vmatpush2.msra.mxu0 0.0
        %1136 = vmatprep.subr.mxu0 0.0
        %1137 = vmatpush2.msra.mxu0 0.0
        %1138 = vmatprep.subr.mxu0 0.0
        %1139 = vmatpush2.msra.mxu0 0.0
        %1140 = vmatprep.subr.mxu0 0.0
        %1141 = vmatpush2.msra.mxu0 0.0
        %1142 = vmatprep.subr.mxu0 0.0
        %1143 = vmatpush2.msra.mxu0 0.0
        %1144 = vmatprep.mubr.f32.mxu0 0.0
        %v1145 = vand.u32 %v788, 4294901760
        %v1146 = vsub.f32 %v788, %v1145
        %v1147 = vand.u32 %v1146, 4294901760
        %1148 = vmatmul.mubr.f32.gmra.mxu0 %v1147
        %v1149 = vpop.f32.mrf.mxu0
        %v1150 = vadd.f32 %v1069, %v1149
        %v1151 = vpop.f32.mrf.mxu0
        %1152 = vdwg.mxu0
        %1153 = vmatprep.subr.mxu0 0.0
        %1154 = vmatpush1.msra.mxu0 0.0
        %1155 = vmatprep.subr.mxu0 0.0
        %1156 = vmatpush1.msra.mxu0 0.0
        %1157 = vmatprep.subr.mxu0 0.0
        %1158 = vmatpush1.msra.mxu0 0.0
        %1159 = vmatprep.subr.mxu0 0.0
        %1160 = vmatpush1.msra.mxu0 0.0
        %1161 = vmatprep.subr.mxu0 0.0
        %1162 = vmatpush1.msra.mxu0 0.0
        %1163 = vmatprep.subr.mxu0 0.0
        %1164 = vmatpush1.msra.mxu0 0.0
        %1165 = vmatprep.subr.mxu0 0.0
        %1166 = vmatpush1.msra.mxu0 0.0
        %1167 = vmatprep.subr.mxu0 0.0
        %1168 = vmatpush1.msra.mxu0 0.0
        %1169 = vmatprep.subr.mxu0 0.0
        %v1170 = vand.u32 %v778, 4294901760
        %v1171 = vsub.f32 %v778, %v1170
        %v1172 = vand.u32 %v1171, 4294901760
        %1173 = vmatpush1.msra.mxu0 %v1172
        %1174 = vmatprep.subr.mxu0 0.0
        %v1175 = vand.u32 %v777, 4294901760
        %v1176 = vsub.f32 %v777, %v1175
        %v1177 = vand.u32 %v1176, 4294901760
        %1178 = vmatpush1.msra.mxu0 %v1177
        %1179 = vmatprep.subr.mxu0 0.0
        %v1180 = vand.u32 %v776, 4294901760
        %v1181 = vsub.f32 %v776, %v1180
        %v1182 = vand.u32 %v1181, 4294901760
        %1183 = vmatpush1.msra.mxu0 %v1182
        %1184 = vmatprep.subr.mxu0 0.0
        %v1185 = vand.u32 %v775, 4294901760
        %v1186 = vsub.f32 %v775, %v1185
        %v1187 = vand.u32 %v1186, 4294901760
        %1188 = vmatpush1.msra.mxu0 %v1187
        %1189 = vmatprep.subr.mxu0 0.0
        %v1190 = vand.u32 %v774, 4294901760
        %v1191 = vsub.f32 %v774, %v1190
        %v1192 = vand.u32 %v1191, 4294901760
        %1193 = vmatpush1.msra.mxu0 %v1192
        %1194 = vmatprep.subr.mxu0 0.0
        %v1195 = vand.u32 %v773, 4294901760
        %v1196 = vsub.f32 %v773, %v1195
        %v1197 = vand.u32 %v1196, 4294901760
        %1198 = vmatpush1.msra.mxu0 %v1197
        %1199 = vmatprep.subr.mxu0 0.0
        %v1200 = vand.u32 %v772, 4294901760
        %v1201 = vsub.f32 %v772, %v1200
        %v1202 = vand.u32 %v1201, 4294901760
        %1203 = vmatpush1.msra.mxu0 %v1202
        %1204 = vmatprep.subr.mxu0 0.0
        %v1205 = vand.u32 %v771, 4294901760
        %v1206 = vsub.f32 %v771, %v1205
        %v1207 = vand.u32 %v1206, 4294901760
        %1208 = vmatpush1.msra.mxu0 %v1207
        %1209 = vmatprep.subr.mxu0 0.0
        %1210 = vmatpush2.msra.mxu0 0.0
        %1211 = vmatprep.subr.mxu0 0.0
        %1212 = vmatpush2.msra.mxu0 0.0
        %1213 = vmatprep.subr.mxu0 0.0
        %1214 = vmatpush2.msra.mxu0 0.0
        %1215 = vmatprep.subr.mxu0 0.0
        %1216 = vmatpush2.msra.mxu0 0.0
        %1217 = vmatprep.subr.mxu0 0.0
        %1218 = vmatpush2.msra.mxu0 0.0
        %1219 = vmatprep.subr.mxu0 0.0
        %1220 = vmatpush2.msra.mxu0 0.0
        %1221 = vmatprep.subr.mxu0 0.0
        %1222 = vmatpush2.msra.mxu0 0.0
        %1223 = vmatprep.subr.mxu0 0.0
        %1224 = vmatpush2.msra.mxu0 0.0
        %1225 = vmatprep.subr.mxu0 0.0
        %1226 = vmatpush2.msra.mxu0 0.0
        %1227 = vmatprep.subr.mxu0 0.0
        %1228 = vmatpush2.msra.mxu0 0.0
        %1229 = vmatprep.subr.mxu0 0.0
        %1230 = vmatpush2.msra.mxu0 0.0
        %1231 = vmatprep.subr.mxu0 0.0
        %1232 = vmatpush2.msra.mxu0 0.0
        %1233 = vmatprep.subr.mxu0 0.0
        %1234 = vmatpush2.msra.mxu0 0.0
        %1235 = vmatprep.subr.mxu0 0.0
        %1236 = vmatpush2.msra.mxu0 0.0
        %1237 = vmatprep.subr.mxu0 0.0
        %1238 = vmatpush2.msra.mxu0 0.0
        %1239 = vmatprep.subr.mxu0 0.0
        %1240 = vmatpush2.msra.mxu0 0.0
        %1241 = vmatprep.mubr.f32.mxu0 0.0
        %v1242 = vand.u32 %v788, 4294901760
        %1243 = vmatmul.mubr.f32.gmra.mxu0 %v1242
        %v1244 = vpop.f32.mrf.mxu0
        %v1245 = vadd.f32 %v1150, %v1244
        %v1246 = vpop.f32.mrf.mxu0
        %1247 = vdwg.mxu0
        %1248 = vmatprep.subr.mxu0 0.0
        %1249 = vmatpush1.msra.mxu0 0.0
        %1250 = vmatprep.subr.mxu0 0.0
        %1251 = vmatpush1.msra.mxu0 0.0
        %1252 = vmatprep.subr.mxu0 0.0
        %1253 = vmatpush1.msra.mxu0 0.0
        %1254 = vmatprep.subr.mxu0 0.0
        %1255 = vmatpush1.msra.mxu0 0.0
        %1256 = vmatprep.subr.mxu0 0.0
        %1257 = vmatpush1.msra.mxu0 0.0
        %1258 = vmatprep.subr.mxu0 0.0
        %1259 = vmatpush1.msra.mxu0 0.0
        %1260 = vmatprep.subr.mxu0 0.0
        %1261 = vmatpush1.msra.mxu0 0.0
        %1262 = vmatprep.subr.mxu0 0.0
        %1263 = vmatpush1.msra.mxu0 0.0
        %1264 = vmatprep.subr.mxu0 0.0
        %v1265 = vand.u32 %v778, 4294901760
        %1266 = vmatpush1.msra.mxu0 %v1265
        %1267 = vmatprep.subr.mxu0 0.0
        %v1268 = vand.u32 %v777, 4294901760
        %1269 = vmatpush1.msra.mxu0 %v1268
        %1270 = vmatprep.subr.mxu0 0.0
        %v1271 = vand.u32 %v776, 4294901760
        %1272 = vmatpush1.msra.mxu0 %v1271
        %1273 = vmatprep.subr.mxu0 0.0
        %v1274 = vand.u32 %v775, 4294901760
        %1275 = vmatpush1.msra.mxu0 %v1274
        %1276 = vmatprep.subr.mxu0 0.0
        %v1277 = vand.u32 %v774, 4294901760
        %1278 = vmatpush1.msra.mxu0 %v1277
        %1279 = vmatprep.subr.mxu0 0.0
        %v1280 = vand.u32 %v773, 4294901760
        %1281 = vmatpush1.msra.mxu0 %v1280
        %1282 = vmatprep.subr.mxu0 0.0
        %v1283 = vand.u32 %v772, 4294901760
        %1284 = vmatpush1.msra.mxu0 %v1283
        %1285 = vmatprep.subr.mxu0 0.0
        %v1286 = vand.u32 %v771, 4294901760
        %1287 = vmatpush1.msra.mxu0 %v1286
        %1288 = vmatprep.subr.mxu0 0.0
        %1289 = vmatpush2.msra.mxu0 0.0
        %1290 = vmatprep.subr.mxu0 0.0
        %1291 = vmatpush2.msra.mxu0 0.0
        %1292 = vmatprep.subr.mxu0 0.0
        %1293 = vmatpush2.msra.mxu0 0.0
        %1294 = vmatprep.subr.mxu0 0.0
        %1295 = vmatpush2.msra.mxu0 0.0
        %1296 = vmatprep.subr.mxu0 0.0
        %1297 = vmatpush2.msra.mxu0 0.0
        %1298 = vmatprep.subr.mxu0 0.0
        %1299 = vmatpush2.msra.mxu0 0.0
        %1300 = vmatprep.subr.mxu0 0.0
        %1301 = vmatpush2.msra.mxu0 0.0
        %1302 = vmatprep.subr.mxu0 0.0
        %1303 = vmatpush2.msra.mxu0 0.0
        %1304 = vmatprep.subr.mxu0 0.0
        %1305 = vmatpush2.msra.mxu0 0.0
        %1306 = vmatprep.subr.mxu0 0.0
        %1307 = vmatpush2.msra.mxu0 0.0
        %1308 = vmatprep.subr.mxu0 0.0
        %1309 = vmatpush2.msra.mxu0 0.0
        %1310 = vmatprep.subr.mxu0 0.0
        %1311 = vmatpush2.msra.mxu0 0.0
        %1312 = vmatprep.subr.mxu0 0.0
        %1313 = vmatpush2.msra.mxu0 0.0
        %1314 = vmatprep.subr.mxu0 0.0
        %1315 = vmatpush2.msra.mxu0 0.0
        %1316 = vmatprep.subr.mxu0 0.0
        %1317 = vmatpush2.msra.mxu0 0.0
        %1318 = vmatprep.subr.mxu0 0.0
        %1319 = vmatpush2.msra.mxu0 0.0
        %1320 = vmatprep.mubr.f32.mxu0 0.0
        %v1321 = vand.u32 %v788, 4294901760
        %1322 = vmatmul.mubr.f32.gmra.mxu0 %v1321
        %v1323 = vpop.f32.mrf.mxu0
        %v1324 = vadd.f32 %v1245, %v1323
        %v1325 = vpop.f32.mrf.mxu0
        %1326 = vdwg.mxu0
        %v1327 = vmax.f32 %v1324, 0.0
        %1328 = vst.msk [vmem:[%s268] sm:$0xff] %vm786, %v1327
        %s1329 = sand.u32 %s141, 1
        %s1330 = scalar_lea.sflag [#allocation4], %s1329
        %s1331 = sand.u32 %s141, 1
        %s1332 = smul.addr %s1331, 8
        %s1333 = scalar_lea.vmem [#allocation8], %s1332
        // Predicated region
        $region53: #{preprocess_forward.1} parent=39 // pred_check
          %p1334 = pneg %p151
        $region54: #{preprocess_forward.1} parent=39 // pred_check_branch
          %1336 = sbr.rel (%p1334) target = $region56
        $region55: #{preprocess_forward.1} parent=39 // pred_region
          %s1338 = ssub.s32 128, 128
          %1339 = vsyncadd %s1330, %s1338
          %s1340 = smul.addr %s23, 128
          %s1341 = scalar_lea.hbm %s5, %s1340
          %s1343 = sshll.u32 %s1333, 4
          %s1344 = int_to_ptr.vmem [resolvable:$true] %s1343
          %1346 = dma.vmem_to_hbm [thread:$0]  %s1344, 128, %s1341, %s1330
        $region56: #{preprocess_forward.1} parent=39 // pred_fallthru
          _
      $region40: #{preprocess_forward.1} parent=5 // pred_fallthru
        _
      %p1347 = scmp.le.s32.totalorder 2, %s18
      // Predicated region
      $region57: #{preprocess_forward.1} parent=5 // pred_check
        %p1348 = pneg %p1347
      $region58: #{preprocess_forward.1} parent=5 // pred_check_branch
        %1350 = sbr.rel (%p1348) target = $region60
      $region59: #{preprocess_forward.1} parent=5 // pred_region
        %s1351 = ssub.s32 %s18, 2
        // Predicated region
        $region61: #{preprocess_forward.1} parent=59 // pred_check
          %p1352 = pneg %p157
        $region62: #{preprocess_forward.1} parent=59 // pred_check_branch
          %1354 = sbr.rel (%p1352) target = $region64
        $region63: #{preprocess_forward.1} parent=59 // pred_region
          %s1355 = sand.u32 %s142, 1
          %s1356 = scalar_lea.sflag [#allocation4], %s1355
          %s1357 = sand.u32 %s142, 1
          %s1358 = smul.addr %s1357, 8
          %s1359 = scalar_lea.vmem [#allocation8], %s1358
          %1360 = dma.done %s1356, 128
        $region64: #{preprocess_forward.1} parent=59 // pred_fallthru
          _
      $region60: #{preprocess_forward.1} parent=5 // pred_fallthru
        _
    $region6: #{preprocess_forward.1} parent=1 // loop_footer
      %s22 = sadd.s32 1, %s18
    $region7: #{preprocess_forward.1} parent=1 // loop_footer_branch
      %17 = sbr.rel target = $region3
    $region8: #{preprocess_forward.1} parent=1 // loop_exit
      _
    %1361 = vsyncpa [#allocation3], 1
    %s1362 = scalar_lea.sflag [#allocation3], 1
    %1363 = vsyncpa %s1362, 1
    %1364 = vsyncpa [#allocation6], 1
    %1365 = vsyncpa [#allocation4], 1
    %s1366 = scalar_lea.sflag [#allocation4], 1
    %1367 = vsyncpa %s1366, 1

</llo_original>
